<compile_context>
chip_gen: v6e
topology: v6e:2x2x1
jax: 0.10.0
libtpu: 0.0.40
codegen_flags: <defaults>
</compile_context>

<pallas_src>
import functools

import jax
import jax.numpy as jnp
from jax.experimental import pallas as pl
from jax.experimental.pallas import tpu as pltpu


def prompt_learner_kernel(im_ref, w1_ref, b1_ref, w2_ref, b2_ref,
                          ctx_ref, out_ref):
    # meta_net.linear1 + ReLU   (MXU matmul + VPU elementwise)
    h = jnp.dot(im_ref[...], w1_ref[...],
                preferred_element_type=jnp.float32)          # (B, hidden)
    h = jnp.maximum(h + b1_ref[...], 0.0)

    # Batch mean hoisted before linear2 (mean commutes with the affine map).
    h_mean = jnp.mean(h, axis=0, keepdims=True)              # (1, hidden)

    # meta_net.linear2 on the mean -> mean bias over the batch.
    bias_mean = jnp.dot(h_mean, w2_ref[...],
                        preferred_element_type=jnp.float32)  # (1, ctx_dim)
    bias_mean = bias_mean + b2_ref[...]

    # mean_B(ctx + bias) == ctx + mean_B(bias): single dense store of the
    # learnable-context rows only.
    out_ref[...] = (ctx_ref[...] + bias_mean).astype(out_ref.dtype)


@functools.partial(jax.jit, static_argnames=())
def prompt_learner_forward(im_features, w1, b1, w2, b2, ctx,
                           token_prefix, token_suffix):
    """JAX wrapper reproducing PromptLearner.forward.

    im_features  : (B, vis_dim)
    w1 : (vis_dim, vis_dim//8), b1 : (vis_dim//8,)
    w2 : (vis_dim//8, ctx_dim), b2 : (ctx_dim,)
    ctx : (n_ctx, ctx_dim)
    token_prefix : (1, 1, ctx_dim), token_suffix : (1, n_suffix, ctx_dim)
    returns prompt : (1, 1 + n_ctx + n_suffix, ctx_dim)
    """
    n_ctx, ctx_dim = ctx.shape
    vmem = pl.BlockSpec(memory_space=pltpu.MemorySpace.VMEM)

    ctx_new = pl.pallas_call(
        prompt_learner_kernel,
        out_shape=jax.ShapeDtypeStruct((n_ctx, ctx_dim), ctx.dtype),
        in_specs=[vmem] * 6,
        out_specs=vmem,
    )(im_features, w1, b1[None, :], w2, b2[None, :], ctx)

    # Frozen prefix/suffix are pure pass-through buffers: assemble the prompt
    # outside the kernel so the kernel never DMAs or rewrites them.  Under jit
    # this splice fuses into the same executable as the kernel call.
    # TODO(synk): fp16 ('prec'=='fp16') path not exercised; fp32 used.
    return jnp.concatenate(
        [token_prefix, ctx_new[None].astype(token_prefix.dtype), token_suffix],
        axis=1)


def reference_forward(im_features, w1, b1, w2, b2, ctx,
                      token_prefix, token_suffix):
    """Pure-JAX reference mirroring the PyTorch forward exactly."""
    h = jnp.maximum(im_features @ w1 + b1, 0.0)
    bias = h @ w2 + b2                       # (B, ctx_dim)
    bias = bias[:, None, :]                  # (B, 1, ctx_dim)
    c = ctx[None, :, :] + bias               # (B, n_ctx, ctx_dim)
    c = jnp.mean(c, axis=0, keepdims=True)   # (1, n_ctx, ctx_dim)
    return jnp.concatenate([token_prefix, c, token_suffix], axis=1)


if __name__ == "__main__":
    # Small shapes consistent with the module (vis_dim -> vis_dim//8 -> ctx_dim).
    # ctx_dim = 128 keeps the kernel's output store lane-dense (real CLIP: 512).
    B = 2
    VIS_DIM = 128
    HIDDEN = VIS_DIM // 8        # 16
    CTX_DIM = 128
    N_CTX = 4
    SEQ = 16
    N_SUFFIX = SEQ - 1 - N_CTX   # 11
    dtype = jnp.float32

    key = jax.random.PRNGKey(0)
    k = jax.random.split(key, 8)

    im_features = jax.random.normal(k[0], (B, VIS_DIM), dtype)
    # meta_net params (synthetic, deterministic)
    w1 = jax.random.normal(k[1], (VIS_DIM, HIDDEN), dtype) * (1.0 / VIS_DIM ** 0.5)
    b1 = jax.random.normal(k[2], (HIDDEN,), dtype) * 0.01
    w2 = jax.random.normal(k[3], (HIDDEN, CTX_DIM), dtype) * (1.0 / HIDDEN ** 0.5)
    b2 = jax.random.normal(k[4], (CTX_DIM,), dtype) * 0.01
    # ctx vectors: nn.init.normal_(std=0.02)
    ctx = jax.random.normal(k[5], (N_CTX, CTX_DIM), dtype) * 0.02
    # frozen token embeddings
    token_prefix = jax.random.normal(k[6], (1, 1, CTX_DIM), dtype)
    token_suffix = jax.random.normal(k[7], (1, N_SUFFIX, CTX_DIM), dtype)

    prompt = prompt_learner_forward(im_features, w1, b1, w2, b2, ctx,
                                    token_prefix, token_suffix)
    prompt = jax.block_until_ready(prompt)

    ref = reference_forward(im_features, w1, b1, w2, b2, ctx,
                            token_prefix, token_suffix)

    assert prompt.shape == (1, SEQ, CTX_DIM), prompt.shape
    assert jnp.allclose(prompt, ref, atol=1e-5, rtol=1e-5), \
        float(jnp.max(jnp.abs(prompt - ref)))

    print("KERNEL_OK")
</pallas_src>

<mosaic_0001>
module attributes {stable_mosaic.version = 11 : i64} {
  func.func @prompt_learner_kernel(%arg0: memref<2x128xf32, #tpu.memory_space<vmem>>, %arg1: memref<128x16xf32, #tpu.memory_space<vmem>>, %arg2: memref<1x16xf32, #tpu.memory_space<vmem>>, %arg3: memref<16x128xf32, #tpu.memory_space<vmem>>, %arg4: memref<1x128xf32, #tpu.memory_space<vmem>>, %arg5: memref<4x128xf32, #tpu.memory_space<vmem>>, %arg6: memref<4x128xf32, #tpu.memory_space<vmem>>) attributes {dimension_semantics = [], scalar_prefetch = 0 : i64, scratch_operands = 0 : i64, tpu.core_type = #tpu.core_type<tc>} {
    %c0 = arith.constant 0 : index
    %c0_0 = arith.constant 0 : index
    %0 = vector.load %arg0[%c0, %c0_0] : memref<2x128xf32, #tpu.memory_space<vmem>>, vector<2x128xf32>
    %c0_1 = arith.constant 0 : index
    %c0_2 = arith.constant 0 : index
    %1 = vector.load %arg1[%c0_1, %c0_2] : memref<128x16xf32, #tpu.memory_space<vmem>>, vector<128x16xf32>
    %cst = arith.constant dense<0.000000e+00> : vector<2x16xf32>
    %2 = tpu.matmul %0, %1, %cst {dimension_numbers = #tpu.dot_dimension_numbers<[1], [0], [0], [1], [0, 0, 1, 1], [], []>} : vector<2x128xf32>, vector<128x16xf32>, vector<2x16xf32> -> vector<2x16xf32>
    %c0_3 = arith.constant 0 : index
    %c0_4 = arith.constant 0 : index
    %3 = vector.load %arg2[%c0_3, %c0_4] : memref<1x16xf32, #tpu.memory_space<vmem>>, vector<1x16xf32>
    %4 = vector.broadcast %3 : vector<1x16xf32> to vector<2x16xf32>
    %5 = arith.addf %2, %4 : vector<2x16xf32>
    %cst_5 = arith.constant 0.000000e+00 : f32
    %6 = vector.broadcast %cst_5 : f32 to vector<2x16xf32>
    %7 = arith.maximumf %5, %6 : vector<2x16xf32>
    %cst_6 = arith.constant dense<0.000000e+00> : vector<16xf32>
    %8 = vector.multi_reduction <add>, %7, %cst_6 [0] : vector<2x16xf32> to vector<16xf32>
    %9 = vector.shape_cast %8 : vector<16xf32> to vector<1x16xf32>
    %cst_7 = arith.constant 2.000000e+00 : f32
    %10 = vector.broadcast %cst_7 : f32 to vector<1x16xf32>
    %11 = arith.divf %9, %10 : vector<1x16xf32>
    %c0_8 = arith.constant 0 : index
    %c0_9 = arith.constant 0 : index
    %12 = vector.load %arg3[%c0_8, %c0_9] : memref<16x128xf32, #tpu.memory_space<vmem>>, vector<16x128xf32>
    %cst_10 = arith.constant dense<0.000000e+00> : vector<1x128xf32>
    %13 = tpu.matmul %11, %12, %cst_10 {dimension_numbers = #tpu.dot_dimension_numbers<[1], [0], [0], [1], [0, 0, 1, 1], [], []>} : vector<1x16xf32>, vector<16x128xf32>, vector<1x128xf32> -> vector<1x128xf32>
    %c0_11 = arith.constant 0 : index
    %c0_12 = arith.constant 0 : index
    %14 = vector.load %arg4[%c0_11, %c0_12] : memref<1x128xf32, #tpu.memory_space<vmem>>, vector<1x128xf32>
    %15 = arith.addf %13, %14 : vector<1x128xf32>
    %c0_13 = arith.constant 0 : index
    %c0_14 = arith.constant 0 : index
    %16 = vector.load %arg5[%c0_13, %c0_14] : memref<4x128xf32, #tpu.memory_space<vmem>>, vector<4x128xf32>
    %17 = vector.broadcast %15 : vector<1x128xf32> to vector<4x128xf32>
    %18 = arith.addf %16, %17 : vector<4x128xf32>
    %c0_15 = arith.constant 0 : index
    %c0_16 = arith.constant 0 : index
    %19 = vector.load %arg6[%c0_15, %c0_16] : memref<4x128xf32, #tpu.memory_space<vmem>>, vector<4x128xf32>
    tpu.vector_store %arg6[%c0_15, %c0_16], %18 {strides = array<i32>} : memref<4x128xf32, #tpu.memory_space<vmem>>, vector<4x128xf32>,
    return
  }
}

</mosaic_0001>

<llo_original>
// kernel: prompt_learner_forward.1
$region0: #{prompt_learner_forward.1}
  #allocation0 [shape = 'u32[]', space=smem, size = 0x4, offset = 0x4, fixed_abs, tag = 'smem constant byte address 0x4 - core index']
  #allocation1 [shape = 'u32[144,128]{1,0:T(1,128)}', space=vmem, size = 0x12000, scoped, tag = 'internal scratch']
  %s0 = inlined_call_operand.vmem [shape: f32[2,128], index: 0, kind: input, shape index: {}]
  %s1 = inlined_call_operand.vmem [shape: f32[128,16], index: 1, kind: input, shape index: {}]
  %s2 = inlined_call_operand.vmem [shape: f32[1,16], index: 2, kind: input, shape index: {}]
  %s3 = inlined_call_operand.vmem [shape: f32[16,128], index: 3, kind: input, shape index: {}]
  %s4 = inlined_call_operand.vmem [shape: f32[1,128], index: 4, kind: input, shape index: {}]
  %s5 = inlined_call_operand.vmem [shape: f32[4,128], index: 5, kind: input, shape index: {}]
  %s6 = inlined_call_operand.vmem [shape: f32[4,128], index: 6, kind: output, shape index: {}]
  %s7 = sld [smem:[#allocation0]]
  $region34: #{prompt_learner_forward.1} parent=0
    _
  %s9 = ssub.s32 1, %s7
  %s10 = scalar_select 0, %s9, %s7
  // Predicated region
  $region2: #{prompt_learner_forward.1} parent=0 // pred_check
    _
  $region3: #{prompt_learner_forward.1} parent=0 // pred_check_branch
    %12 = sbr.rel (0) target = $region5
  $region4: #{prompt_learner_forward.1} parent=0 // pred_region
    _
  $region5: #{prompt_learner_forward.1} parent=0 // pred_fallthru
    _
  // Predicated region
  $region6: #{prompt_learner_forward.1} parent=0 // pred_check
    _
  $region7: #{prompt_learner_forward.1} parent=0 // pred_check_branch
    %14 = sbr.rel (0) target = $region9
  $region8: #{prompt_learner_forward.1} parent=0 // pred_region
    _
  $region9: #{prompt_learner_forward.1} parent=0 // pred_fallthru
    _
  // Predicated region
  $region10: #{prompt_learner_forward.1} parent=0 // pred_check
    _
  $region11: #{prompt_learner_forward.1} parent=0 // pred_check_branch
    %16 = sbr.rel (0) target = $region13
  $region12: #{prompt_learner_forward.1} parent=0 // pred_region
    _
  $region13: #{prompt_learner_forward.1} parent=0 // pred_fallthru
    _
  // Predicated region
  $region14: #{prompt_learner_forward.1} parent=0 // pred_check
    _
  $region15: #{prompt_learner_forward.1} parent=0 // pred_check_branch
    %18 = sbr.rel (0) target = $region17
  $region16: #{prompt_learner_forward.1} parent=0 // pred_region
    _
  $region17: #{prompt_learner_forward.1} parent=0 // pred_fallthru
    _
  // Predicated region
  $region18: #{prompt_learner_forward.1} parent=0 // pred_check
    _
  $region19: #{prompt_learner_forward.1} parent=0 // pred_check_branch
    %20 = sbr.rel (0) target = $region21
  $region20: #{prompt_learner_forward.1} parent=0 // pred_region
    _
  $region21: #{prompt_learner_forward.1} parent=0 // pred_fallthru
    _
  // Predicated region
  $region22: #{prompt_learner_forward.1} parent=0 // pred_check
    _
  $region23: #{prompt_learner_forward.1} parent=0 // pred_check_branch
    %22 = sbr.rel (0) target = $region25
  $region24: #{prompt_learner_forward.1} parent=0 // pred_region
    _
  $region25: #{prompt_learner_forward.1} parent=0 // pred_fallthru
    _
  %v23 = vld [vmem:[%s0] sm:$0x3]
  %v24 = vld [vmem:[%s1] sm:$0xff]
  %v25 = vld [vmem:[%s1 + $0x8] sm:$0xff]
  %v26 = vld [vmem:[%s1 + $0x10] sm:$0xff]
  %v27 = vld [vmem:[%s1 + $0x18] sm:$0xff]
  %v28 = vld [vmem:[%s1 + $0x20] sm:$0xff]
  %v29 = vld [vmem:[%s1 + $0x28] sm:$0xff]
  %v30 = vld [vmem:[%s1 + $0x30] sm:$0xff]
  %v31 = vld [vmem:[%s1 + $0x38] sm:$0xff]
  %v32 = vld [vmem:[%s1 + $0x40] sm:$0xff]
  %v33 = vld [vmem:[%s1 + $0x48] sm:$0xff]
  %v34 = vld [vmem:[%s1 + $0x50] sm:$0xff]
  %v35 = vld [vmem:[%s1 + $0x58] sm:$0xff]
  %v36 = vld [vmem:[%s1 + $0x60] sm:$0xff]
  %v37 = vld [vmem:[%s1 + $0x68] sm:$0xff]
  %v38 = vld [vmem:[%s1 + $0x70] sm:$0xff]
  %v39 = vld [vmem:[%s1 + $0x78] sm:$0xff]
  %v40 = vld [vmem:[%s2] sm:$0x1]
  %v42 = vlaneseq
  %v43 = vshrl.u32 %v42, 7
  %v44 = vsub.s32 0, %v43
  %v45 = vrot.slane %v40, %v44
  %47 = vmatprep.subr.mxu0 0.0
  %48 = vmatpush1.msra.mxu0 %v39
  %49 = vmatprep.subr.mxu0 0.0
  %50 = vmatpush1.msra.mxu0 %v38
  %51 = vmatprep.subr.mxu0 0.0
  %52 = vmatpush1.msra.mxu0 %v37
  %53 = vmatprep.subr.mxu0 0.0
  %54 = vmatpush1.msra.mxu0 %v36
  %55 = vmatprep.subr.mxu0 0.0
  %56 = vmatpush1.msra.mxu0 %v35
  %57 = vmatprep.subr.mxu0 0.0
  %58 = vmatpush1.msra.mxu0 %v34
  %59 = vmatprep.subr.mxu0 0.0
  %60 = vmatpush1.msra.mxu0 %v33
  %61 = vmatprep.subr.mxu0 0.0
  %62 = vmatpush1.msra.mxu0 %v32
  %63 = vmatprep.subr.mxu0 0.0
  %64 = vmatpush1.msra.mxu0 %v31
  %65 = vmatprep.subr.mxu0 0.0
  %66 = vmatpush1.msra.mxu0 %v30
  %67 = vmatprep.subr.mxu0 0.0
  %68 = vmatpush1.msra.mxu0 %v29
  %69 = vmatprep.subr.mxu0 0.0
  %70 = vmatpush1.msra.mxu0 %v28
  %71 = vmatprep.subr.mxu0 0.0
  %72 = vmatpush1.msra.mxu0 %v27
  %73 = vmatprep.subr.mxu0 0.0
  %74 = vmatpush1.msra.mxu0 %v26
  %75 = vmatprep.subr.mxu0 0.0
  %76 = vmatpush1.msra.mxu0 %v25
  %77 = vmatprep.subr.mxu0 0.0
  %78 = vmatpush1.msra.mxu0 %v24
  %79 = vmatprep.subr.mxu0 0.0
  %80 = vmatpush2.msra.mxu0 0.0
  %81 = vmatprep.subr.mxu0 0.0
  %82 = vmatpush2.msra.mxu0 0.0
  %83 = vmatprep.subr.mxu0 0.0
  %84 = vmatpush2.msra.mxu0 0.0
  %85 = vmatprep.subr.mxu0 0.0
  %86 = vmatpush2.msra.mxu0 0.0
  %87 = vmatprep.subr.mxu0 0.0
  %88 = vmatpush2.msra.mxu0 0.0
  %89 = vmatprep.subr.mxu0 0.0
  %90 = vmatpush2.msra.mxu0 0.0
  %91 = vmatprep.subr.mxu0 0.0
  %92 = vmatpush2.msra.mxu0 0.0
  %93 = vmatprep.subr.mxu0 0.0
  %94 = vmatpush2.msra.mxu0 0.0
  %95 = vmatprep.subr.mxu0 0.0
  %96 = vmatpush2.msra.mxu0 0.0
  %97 = vmatprep.subr.mxu0 0.0
  %98 = vmatpush2.msra.mxu0 0.0
  %99 = vmatprep.subr.mxu0 0.0
  %100 = vmatpush2.msra.mxu0 0.0
  %101 = vmatprep.subr.mxu0 0.0
  %102 = vmatpush2.msra.mxu0 0.0
  %103 = vmatprep.subr.mxu0 0.0
  %104 = vmatpush2.msra.mxu0 0.0
  %105 = vmatprep.subr.mxu0 0.0
  %106 = vmatpush2.msra.mxu0 0.0
  %107 = vmatprep.subr.mxu0 0.0
  %108 = vmatpush2.msra.mxu0 0.0
  %109 = vmatprep.subr.mxu0 0.0
  %110 = vmatpush2.msra.mxu0 0.0
  %111 = vmatprep.mubr.f32.mxu0 0.0
  %112 = vmatmul.mubr.f32.gmra.mxu0 %v23
  %v113 = vpop.f32.mrf.mxu0
  %v114 = vadd.f32 %v45, %v113
  %v115 = vpop.f32.mrf.mxu0
  %116 = vdwg.mxu0
  %v117 = vmax.f32 %v114, 0.0
  %vm118 = vcmask 123904
  %v119 = vsel %vm118, %v117, 0.0
  %v120 = vrot.slane %v119, 4
  %v121 = vadd.f32 %v119, %v120
  %v122 = vrot.slane %v121, 2
  %v123 = vadd.f32 %v121, %v122
  %v124 = vrot.slane %v123, 1
  %v125 = vadd.f32 %v123, %v124
  %v126 = vrcp.pop 2.0
  %v127 = vmul.f32 %v125, %v126
  %v128 = vld [vmem:[%s3] sm:$0xff]
  %v129 = vld [vmem:[%s3 + $0x8] sm:$0xff]
  %v130 = vld [vmem:[%s4] sm:$0x1]
  %vm131 = vcmask 130048
  %v133 = vsel %vm131, %v127, 0
  %135 = vmatprep.subr.mxu0 0.0
  %136 = vmatpush1.msra.mxu0 0.0
  %137 = vmatprep.subr.mxu0 0.0
  %138 = vmatpush1.msra.mxu0 0.0
  %139 = vmatprep.subr.mxu0 0.0
  %140 = vmatpush1.msra.mxu0 0.0
  %141 = vmatprep.subr.mxu0 0.0
  %142 = vmatpush1.msra.mxu0 0.0
  %143 = vmatprep.subr.mxu0 0.0
  %144 = vmatpush1.msra.mxu0 0.0
  %145 = vmatprep.subr.mxu0 0.0
  %146 = vmatpush1.msra.mxu0 0.0
  %147 = vmatprep.subr.mxu0 0.0
  %148 = vmatpush1.msra.mxu0 0.0
  %149 = vmatprep.subr.mxu0 0.0
  %150 = vmatpush1.msra.mxu0 0.0
  %151 = vmatprep.subr.mxu0 0.0
  %152 = vmatpush1.msra.mxu0 0.0
  %153 = vmatprep.subr.mxu0 0.0
  %154 = vmatpush1.msra.mxu0 0.0
  %155 = vmatprep.subr.mxu0 0.0
  %156 = vmatpush1.msra.mxu0 0.0
  %157 = vmatprep.subr.mxu0 0.0
  %158 = vmatpush1.msra.mxu0 0.0
  %159 = vmatprep.subr.mxu0 0.0
  %160 = vmatpush1.msra.mxu0 0.0
  %161 = vmatprep.subr.mxu0 0.0
  %162 = vmatpush1.msra.mxu0 0.0
  %163 = vmatprep.subr.mxu0 0.0
  %164 = vmatpush1.msra.mxu0 %v129
  %165 = vmatprep.subr.mxu0 0.0
  %166 = vmatpush1.msra.mxu0 %v128
  %167 = vmatprep.subr.mxu0 0.0
  %168 = vmatpush2.msra.mxu0 0.0
  %169 = vmatprep.subr.mxu0 0.0
  %170 = vmatpush2.msra.mxu0 0.0
  %171 = vmatprep.subr.mxu0 0.0
  %172 = vmatpush2.msra.mxu0 0.0
  %173 = vmatprep.subr.mxu0 0.0
  %174 = vmatpush2.msra.mxu0 0.0
  %175 = vmatprep.subr.mxu0 0.0
  %176 = vmatpush2.msra.mxu0 0.0
  %177 = vmatprep.subr.mxu0 0.0
  %178 = vmatpush2.msra.mxu0 0.0
  %179 = vmatprep.subr.mxu0 0.0
  %180 = vmatpush2.msra.mxu0 0.0
  %181 = vmatprep.subr.mxu0 0.0
  %182 = vmatpush2.msra.mxu0 0.0
  %183 = vmatprep.subr.mxu0 0.0
  %184 = vmatpush2.msra.mxu0 0.0
  %185 = vmatprep.subr.mxu0 0.0
  %186 = vmatpush2.msra.mxu0 0.0
  %187 = vmatprep.subr.mxu0 0.0
  %188 = vmatpush2.msra.mxu0 0.0
  %189 = vmatprep.subr.mxu0 0.0
  %190 = vmatpush2.msra.mxu0 0.0
  %191 = vmatprep.subr.mxu0 0.0
  %192 = vmatpush2.msra.mxu0 0.0
  %193 = vmatprep.subr.mxu0 0.0
  %194 = vmatpush2.msra.mxu0 0.0
  %195 = vmatprep.subr.mxu0 0.0
  %196 = vmatpush2.msra.mxu0 0.0
  %197 = vmatprep.subr.mxu0 0.0
  %198 = vmatpush2.msra.mxu0 0.0
  %199 = vmatprep.mubr.f32.mxu0 0.0
  %200 = vmatmul.mubr.f32.gmra.mxu0 %v133
  %v201 = vpop.f32.mrf.mxu0
  %v202 = vadd.f32 %v130, %v201
  %v203 = vpop.f32.mrf.mxu0
  %204 = vdwg.mxu0
  %v205 = vld [vmem:[%s5] sm:$0xf]
  %v206 = vlaneseq
  %v207 = vshrl.u32 %v206, 7
  %v208 = vsub.s32 0, %v207
  %v209 = vrot.slane %v202, %v208
  %v210 = vadd.f32 %v205, %v209
  %211 = vst [vmem:[%s6] sm:$0xf] %v210
  // Predicated region
  $region26: #{prompt_learner_forward.1} parent=0 // pred_check
    _
  $region27: #{prompt_learner_forward.1} parent=0 // pred_check_branch
    %213 = sbr.rel (0) target = $region29
  $region28: #{prompt_learner_forward.1} parent=0 // pred_region
    _
  $region29: #{prompt_learner_forward.1} parent=0 // pred_fallthru
    _
  // Predicated region
  $region30: #{prompt_learner_forward.1} parent=0 // pred_check
    _
  $region31: #{prompt_learner_forward.1} parent=0 // pred_check_branch
    %215 = sbr.rel (0) target = $region33
  $region32: #{prompt_learner_forward.1} parent=0 // pred_region
    _
  $region33: #{prompt_learner_forward.1} parent=0 // pred_fallthru
    _

</llo_original>
